<compile_context>
chip_gen: v7x
topology: tpu7x:2x2x1
jax: 0.10.0
libtpu: 0.0.40
codegen_flags: <defaults>
</compile_context>

<pallas_src>
import functools

import jax
import jax.numpy as jnp
from jax import lax
from jax.experimental import pallas as pl
from jax.experimental.pallas import tpu as pltpu


def _shear_kernel(shear_ref, img_ref, out_ref, *, H: int, W: int, TN: int):
    """shear_ref: (2*B,) f32 in SMEM; img_ref: (1, C, H*W); out_ref: (1, C, TN)."""
    b = pl.program_id(0)
    t = pl.program_id(1)
    shx = shear_ref[2 * b]
    shy = shear_ref[2 * b + 1]
    # Same singularity as kornia when shx*shy == 1 (degenerate shear).
    inv_det = 1.0 / (1.0 - shx * shy)

    HW = H * W
    # Output pixel linear indices for this tile, along lanes: shape (1, TN).
    p = (t * TN + lax.broadcasted_iota(jnp.int32, (1, TN), 1)).astype(jnp.float32)
    # Exact integer y = floor(p / W), x = p - y*W (float trick; exact for HW < 2^22).
    y_out = jnp.floor((p + 0.5) / float(W))
    x_out = p - y_out * float(W)

    # Inverse-warped source coordinates (pixel space, align_corners=True).
    x_src = (x_out - shx * y_out) * inv_det
    y_src = (y_out - shy * x_out) * inv_det

    x0 = jnp.floor(x_src)
    y0 = jnp.floor(y_src)
    fx = x_src - x0            # weight of x1 = x0 + 1
    fy = y_src - y0            # weight of y1 = y0 + 1

    # Per-axis validity of the two taps (zeros padding).
    vx0 = (x0 >= 0.0) & (x0 <= float(W - 1))
    vx1 = (x0 >= -1.0) & (x0 <= float(W - 2))
    vy0 = (y0 >= 0.0) & (y0 <= float(H - 1))
    vy1 = (y0 >= -1.0) & (y0 <= float(H - 2))

    w00 = jnp.where(vx0 & vy0, (1.0 - fx) * (1.0 - fy), 0.0)   # (1, TN)
    w10 = jnp.where(vx1 & vy0, fx * (1.0 - fy), 0.0)
    w01 = jnp.where(vx0 & vy1, (1.0 - fx) * fy, 0.0)
    w11 = jnp.where(vx1 & vy1, fx * fy, 0.0)

    # Single base index per output pixel; corners are fixed offsets from it.
    # Any out-of-range / row-wrapped base can only match rows whose weight is 0.
    lin00 = (y0 * float(W) + x0).astype(jnp.int32)              # (1, TN)
    q_idx = lax.broadcasted_iota(jnp.int32, (HW, TN), 0)        # input linear idx
    delta = q_idx - lin00                                       # (HW, TN)

    gmat = jnp.where(delta == 0, w00, 0.0)
    gmat = gmat + jnp.where(delta == 1, w10, 0.0)
    gmat = gmat + jnp.where(delta == W, w01, 0.0)
    gmat = gmat + jnp.where(delta == W + 1, w11, 0.0)           # (HW, TN)

    # bf16 MXU matmul with f32 accumulation (bilinear weights are in [0,1]).
    img = img_ref[0].astype(jnp.bfloat16)                       # (C, HW)
    out_ref[0] = jnp.dot(img, gmat.astype(jnp.bfloat16),
                         preferred_element_type=jnp.float32).astype(out_ref.dtype)


def _pick_tile(hw: int, max_tn: int = 512) -> int:
    """Largest multiple-of-128 divisor of hw that is <= max_tn; else full hw."""
    best = None
    t = 128
    limit = min(hw, max_tn)
    while t <= limit:
        if hw % t == 0:
            best = t
        t += 128
    return best if best is not None else hw


def shear_pallas(img, shear_params, mode="bilinear", padding_mode="zeros",
                 align_corners=True):
    """img: (B, C, H, W) f32 NCHW; shear_params: (B, 2) f32 [shx, shy]."""
    # TODO(synk): only the Shear module defaults (bilinear / zeros / align_corners=True)
    # are implemented; 'nearest' / 'border' / 'reflection' are not.
    assert mode == "bilinear" and padding_mode == "zeros" and align_corners
    B, C, H, W = img.shape
    HW = H * W
    assert HW < (1 << 22), "float32 index trick requires H*W < 2^22"
    img_flat = img.reshape(B, C, HW)
    # Flat 1D shear table avoids 2D SMEM (8,128) padding.
    shear_flat = shear_params.astype(jnp.float32).reshape(-1)

    TN = _pick_tile(HW)
    n_tiles = HW // TN

    kernel = functools.partial(_shear_kernel, H=H, W=W, TN=TN)
    out_flat = pl.pallas_call(
        kernel,
        out_shape=jax.ShapeDtypeStruct((B, C, HW), img.dtype),
        grid_spec=pltpu.PrefetchScalarGridSpec(
            num_scalar_prefetch=0,
            grid=(B, n_tiles),
            in_specs=[
                # Whole (2*B,) shear table lives in SMEM; indexed by program_id.
                pl.BlockSpec(memory_space=pltpu.MemorySpace.SMEM),
                # Full image of the current batch (needed as matmul K axis).
                pl.BlockSpec((1, C, HW), lambda b, t: (b, 0, 0)),
            ],
            out_specs=pl.BlockSpec((1, C, TN), lambda b, t: (b, 0, t)),
        ),
        compiler_params=pltpu.CompilerParams(
            dimension_semantics=("parallel", "parallel"),
            vmem_limit_bytes=48 * 1024 * 1024,
        ),
    )(shear_flat, img_flat)
    return out_flat.reshape(B, C, H, W)


def shear_reference(img, shear_params):
    """Pure-JAX reference (same math, plain gather) for validation."""
    B, C, H, W = img.shape
    y_out, x_out = jnp.meshgrid(jnp.arange(H, dtype=jnp.float32),
                                jnp.arange(W, dtype=jnp.float32), indexing="ij")

    def one(imb, sh):
        shx, shy = sh[0], sh[1]
        inv_det = 1.0 / (1.0 - shx * shy)
        xs = (x_out - shx * y_out) * inv_det
        ys = (y_out - shy * x_out) * inv_det
        x0 = jnp.floor(xs); x1 = x0 + 1.0
        y0 = jnp.floor(ys); y1 = y0 + 1.0
        wx1 = xs - x0; wx0 = 1.0 - wx1
        wy1 = ys - y0; wy0 = 1.0 - wy1

        def g(xc, yc):
            valid = (xc >= 0) & (xc <= W - 1) & (yc >= 0) & (yc <= H - 1)
            xi = jnp.clip(xc, 0, W - 1).astype(jnp.int32)
            yi = jnp.clip(yc, 0, H - 1).astype(jnp.int32)
            v = imb[:, yi, xi]
            return jnp.where(valid[None], v, 0.0)

        return (g(x0, y0) * (wx0 * wy0)[None] + g(x1, y0) * (wx1 * wy0)[None]
                + g(x0, y1) * (wx0 * wy1)[None] + g(x1, y1) * (wx1 * wy1)[None])

    return jax.vmap(one)(img, shear_params)


if __name__ == "__main__":
    key = jax.random.PRNGKey(0)
    B, C, H, W = 2, 4, 16, 16
    img = jax.random.uniform(key, (B, C, H, W), dtype=jnp.float32)
    # Deterministic "parameter" of the Shear module: shear angles, shape (B, 2).
    shear_factor = jnp.array([[0.5, 0.0],
                              [0.1, -0.2]], dtype=jnp.float32)

    out = jax.block_until_ready(shear_pallas(img, shear_factor))
    assert out.shape == (B, C, H, W) and out.dtype == jnp.float32

    # Sanity 1: zero shear is identity (bf16 matmul -> loose tolerance).
    out_id = jax.block_until_ready(
        shear_pallas(img, jnp.zeros((B, 2), jnp.float32)))
    assert jnp.allclose(out_id, img, atol=2e-2)

    # Sanity 2: matches pure-JAX reference of the same warp (bf16 tolerance).
    ref = shear_reference(img, shear_factor)
    assert jnp.allclose(out, ref, atol=2e-2), float(jnp.max(jnp.abs(out - ref)))

    # Sanity 3: multi-tile path (HW=768 -> TN=384, two output tiles), B=1.
    img2 = jax.random.uniform(jax.random.PRNGKey(1), (1, 3, 24, 32),
                              dtype=jnp.float32)
    sh2 = jnp.array([[-0.3, 0.15]], dtype=jnp.float32)
    out2 = jax.block_until_ready(shear_pallas(img2, sh2))
    ref2 = shear_reference(img2, sh2)
    assert jnp.allclose(out2, ref2, atol=2e-2), float(jnp.max(jnp.abs(out2 - ref2)))

    print("KERNEL_OK")
</pallas_src>

<mosaic_0001>
module attributes {stable_mosaic.version = 11 : i64} {
  func.func @_shear_kernel(%arg0: i32, %arg1: i32, %arg2: memref<4xf32, #tpu.memory_space<smem>>, %arg3: memref<1x4x256xf32, #tpu.memory_space<vmem>>, %arg4: memref<1x4x256xf32, #tpu.memory_space<vmem>>) attributes {dimension_semantics = [#tpu.dimension_semantics<parallel>, #tpu.dimension_semantics<parallel>], iteration_bounds = array<i64: 2, 1>, scalar_prefetch = 0 : i64, scratch_operands = 0 : i64, tpu.core_type = #tpu.core_type<tc>, window_params = [{transform_indices = @transform_0, window_bounds = array<i64: 4>}, {transform_indices = @transform_1, window_bounds = array<i64: 1, 4, 256>}, {transform_indices = @transform_2, window_bounds = array<i64: 1, 4, 256>}]} {
    %c2_i32 = arith.constant 2 : i32
    %0 = arith.muli %c2_i32, %arg0 : i32
    %1 = arith.index_cast %0 : i32 to index
    %2 = memref.load %arg2[%1] : memref<4xf32, #tpu.memory_space<smem>>
    %c2_i32_0 = arith.constant 2 : i32
    %3 = arith.muli %c2_i32_0, %arg0 : i32
    %c1_i32 = arith.constant 1 : i32
    %4 = arith.addi %3, %c1_i32 : i32
    %5 = arith.index_cast %4 : i32 to index
    %6 = memref.load %arg2[%5] : memref<4xf32, #tpu.memory_space<smem>>
    %7 = arith.mulf %2, %6 : f32
    %cst = arith.constant 1.000000e+00 : f32
    %8 = arith.subf %cst, %7 : f32
    %cst_1 = arith.constant 1.000000e+00 : f32
    %9 = arith.divf %cst_1, %8 : f32
    %c256_i32 = arith.constant 256 : i32
    %10 = arith.muli %arg1, %c256_i32 : i32
    %11 = tpu.iota {dimensions = array<i32: 1>} : vector<1x256xi32>
    %12 = vector.broadcast %10 : i32 to vector<1x256xi32>
    %13 = arith.addi %12, %11 : vector<1x256xi32>
    %14 = arith.sitofp %13 : vector<1x256xi32> to vector<1x256xf32>
    %cst_2 = arith.constant 5.000000e-01 : f32
    %15 = vector.broadcast %cst_2 : f32 to vector<1x256xf32>
    %16 = arith.addf %14, %15 : vector<1x256xf32>
    %cst_3 = arith.constant 1.600000e+01 : f32
    %17 = vector.broadcast %cst_3 : f32 to vector<1x256xf32>
    %18 = arith.divf %16, %17 : vector<1x256xf32>
    %19 = math.floor %18 : vector<1x256xf32>
    %cst_4 = arith.constant 1.600000e+01 : f32
    %20 = vector.broadcast %cst_4 : f32 to vector<1x256xf32>
    %21 = arith.mulf %19, %20 : vector<1x256xf32>
    %22 = arith.subf %14, %21 : vector<1x256xf32>
    %23 = vector.broadcast %2 : f32 to vector<1x256xf32>
    %24 = arith.mulf %23, %19 : vector<1x256xf32>
    %25 = arith.subf %22, %24 : vector<1x256xf32>
    %26 = vector.broadcast %9 : f32 to vector<1x256xf32>
    %27 = arith.mulf %25, %26 : vector<1x256xf32>
    %28 = vector.broadcast %6 : f32 to vector<1x256xf32>
    %29 = arith.mulf %28, %22 : vector<1x256xf32>
    %30 = arith.subf %19, %29 : vector<1x256xf32>
    %31 = vector.broadcast %9 : f32 to vector<1x256xf32>
    %32 = arith.mulf %30, %31 : vector<1x256xf32>
    %33 = math.floor %27 : vector<1x256xf32>
    %34 = math.floor %32 : vector<1x256xf32>
    %35 = arith.subf %27, %33 : vector<1x256xf32>
    %36 = arith.subf %32, %34 : vector<1x256xf32>
    %cst_5 = arith.constant 0.000000e+00 : f32
    %37 = vector.broadcast %cst_5 : f32 to vector<1x256xf32>
    %38 = arith.cmpf oge, %33, %37 : vector<1x256xf32>
    %cst_6 = arith.constant 1.500000e+01 : f32
    %39 = vector.broadcast %cst_6 : f32 to vector<1x256xf32>
    %40 = arith.cmpf ole, %33, %39 : vector<1x256xf32>
    %41 = arith.andi %38, %40 : vector<1x256xi1>
    %cst_7 = arith.constant -1.000000e+00 : f32
    %42 = vector.broadcast %cst_7 : f32 to vector<1x256xf32>
    %43 = arith.cmpf oge, %33, %42 : vector<1x256xf32>
    %cst_8 = arith.constant 1.400000e+01 : f32
    %44 = vector.broadcast %cst_8 : f32 to vector<1x256xf32>
    %45 = arith.cmpf ole, %33, %44 : vector<1x256xf32>
    %46 = arith.andi %43, %45 : vector<1x256xi1>
    %cst_9 = arith.constant 0.000000e+00 : f32
    %47 = vector.broadcast %cst_9 : f32 to vector<1x256xf32>
    %48 = arith.cmpf oge, %34, %47 : vector<1x256xf32>
    %cst_10 = arith.constant 1.500000e+01 : f32
    %49 = vector.broadcast %cst_10 : f32 to vector<1x256xf32>
    %50 = arith.cmpf ole, %34, %49 : vector<1x256xf32>
    %51 = arith.andi %48, %50 : vector<1x256xi1>
    %cst_11 = arith.constant -1.000000e+00 : f32
    %52 = vector.broadcast %cst_11 : f32 to vector<1x256xf32>
    %53 = arith.cmpf oge, %34, %52 : vector<1x256xf32>
    %cst_12 = arith.constant 1.400000e+01 : f32
    %54 = vector.broadcast %cst_12 : f32 to vector<1x256xf32>
    %55 = arith.cmpf ole, %34, %54 : vector<1x256xf32>
    %56 = arith.andi %53, %55 : vector<1x256xi1>
    %57 = arith.andi %41, %51 : vector<1x256xi1>
    %cst_13 = arith.constant 1.000000e+00 : f32
    %58 = vector.broadcast %cst_13 : f32 to vector<1x256xf32>
    %59 = arith.subf %58, %35 : vector<1x256xf32>
    %cst_14 = arith.constant 1.000000e+00 : f32
    %60 = vector.broadcast %cst_14 : f32 to vector<1x256xf32>
    %61 = arith.subf %60, %36 : vector<1x256xf32>
    %62 = arith.mulf %59, %61 : vector<1x256xf32>
    %cst_15 = arith.constant 0.000000e+00 : f32
    %63 = vector.broadcast %cst_15 : f32 to vector<1x256xf32>
    %64 = arith.select %57, %62, %63 : vector<1x256xi1>, vector<1x256xf32>
    %65 = arith.andi %46, %51 : vector<1x256xi1>
    %cst_16 = arith.constant 1.000000e+00 : f32
    %66 = vector.broadcast %cst_16 : f32 to vector<1x256xf32>
    %67 = arith.subf %66, %36 : vector<1x256xf32>
    %68 = arith.mulf %35, %67 : vector<1x256xf32>
    %cst_17 = arith.constant 0.000000e+00 : f32
    %69 = vector.broadcast %cst_17 : f32 to vector<1x256xf32>
    %70 = arith.select %65, %68, %69 : vector<1x256xi1>, vector<1x256xf32>
    %71 = arith.andi %41, %56 : vector<1x256xi1>
    %cst_18 = arith.constant 1.000000e+00 : f32
    %72 = vector.broadcast %cst_18 : f32 to vector<1x256xf32>
    %73 = arith.subf %72, %35 : vector<1x256xf32>
    %74 = arith.mulf %73, %36 : vector<1x256xf32>
    %cst_19 = arith.constant 0.000000e+00 : f32
    %75 = vector.broadcast %cst_19 : f32 to vector<1x256xf32>
    %76 = arith.select %71, %74, %75 : vector<1x256xi1>, vector<1x256xf32>
    %77 = arith.andi %46, %56 : vector<1x256xi1>
    %78 = arith.mulf %35, %36 : vector<1x256xf32>
    %cst_20 = arith.constant 0.000000e+00 : f32
    %79 = vector.broadcast %cst_20 : f32 to vector<1x256xf32>
    %80 = arith.select %77, %78, %79 : vector<1x256xi1>, vector<1x256xf32>
    %cst_21 = arith.constant 1.600000e+01 : f32
    %81 = vector.broadcast %cst_21 : f32 to vector<1x256xf32>
    %82 = arith.mulf %34, %81 : vector<1x256xf32>
    %83 = arith.addf %82, %33 : vector<1x256xf32>
    %84 = arith.fptosi %83 : vector<1x256xf32> to vector<1x256xi32>
    %85 = tpu.iota {dimensions = array<i32: 0>} : vector<256x256xi32>
    %86 = vector.broadcast %84 : vector<1x256xi32> to vector<256x256xi32>
    %87 = arith.subi %85, %86 : vector<256x256xi32>
    %c0_i32 = arith.constant 0 : i32
    %88 = vector.broadcast %c0_i32 : i32 to vector<256x256xi32>
    %89 = arith.cmpi eq, %87, %88 : vector<256x256xi32>
    %cst_22 = arith.constant 0.000000e+00 : f32
    %90 = vector.shape_cast %64 : vector<1x256xf32> to vector<1x256xf32>
    %91 = vector.broadcast %90 : vector<1x256xf32> to vector<256x256xf32>
    %92 = vector.broadcast %cst_22 : f32 to vector<256x256xf32>
    %93 = arith.select %89, %91, %92 : vector<256x256xi1>, vector<256x256xf32>
    %c1_i32_23 = arith.constant 1 : i32
    %94 = vector.broadcast %c1_i32_23 : i32 to vector<256x256xi32>
    %95 = arith.cmpi eq, %87, %94 : vector<256x256xi32>
    %cst_24 = arith.constant 0.000000e+00 : f32
    %96 = vector.shape_cast %70 : vector<1x256xf32> to vector<1x256xf32>
    %97 = vector.broadcast %96 : vector<1x256xf32> to vector<256x256xf32>
    %98 = vector.broadcast %cst_24 : f32 to vector<256x256xf32>
    %99 = arith.select %95, %97, %98 : vector<256x256xi1>, vector<256x256xf32>
    %100 = arith.addf %93, %99 : vector<256x256xf32>
    %c16_i32 = arith.constant 16 : i32
    %101 = vector.broadcast %c16_i32 : i32 to vector<256x256xi32>
    %102 = arith.cmpi eq, %87, %101 : vector<256x256xi32>
    %cst_25 = arith.constant 0.000000e+00 : f32
    %103 = vector.shape_cast %76 : vector<1x256xf32> to vector<1x256xf32>
    %104 = vector.broadcast %103 : vector<1x256xf32> to vector<256x256xf32>
    %105 = vector.broadcast %cst_25 : f32 to vector<256x256xf32>
    %106 = arith.select %102, %104, %105 : vector<256x256xi1>, vector<256x256xf32>
    %107 = arith.addf %100, %106 : vector<256x256xf32>
    %c17_i32 = arith.constant 17 : i32
    %108 = vector.broadcast %c17_i32 : i32 to vector<256x256xi32>
    %109 = arith.cmpi eq, %87, %108 : vector<256x256xi32>
    %cst_26 = arith.constant 0.000000e+00 : f32
    %110 = vector.shape_cast %80 : vector<1x256xf32> to vector<1x256xf32>
    %111 = vector.broadcast %110 : vector<1x256xf32> to vector<256x256xf32>
    %112 = vector.broadcast %cst_26 : f32 to vector<256x256xf32>
    %113 = arith.select %109, %111, %112 : vector<256x256xi1>, vector<256x256xf32>
    %114 = arith.addf %107, %113 : vector<256x256xf32>
    %c0 = arith.constant 0 : index
    %c0_27 = arith.constant 0 : index
    %c0_28 = arith.constant 0 : index
    %115 = vector.load %arg3[%c0, %c0_27, %c0_28] : memref<1x4x256xf32, #tpu.memory_space<vmem>>, vector<1x4x256xf32>
    %116 = vector.shape_cast %115 : vector<1x4x256xf32> to vector<4x256xf32>
    %117 = arith.truncf %116 : vector<4x256xf32> to vector<4x256xbf16>
    %118 = arith.truncf %114 : vector<256x256xf32> to vector<256x256xbf16>
    %cst_29 = arith.constant dense<0.000000e+00> : vector<4x256xf32>
    %119 = tpu.matmul %117, %118, %cst_29 {dimension_numbers = #tpu.dot_dimension_numbers<[1], [0], [0], [1], [0, 0, 1, 1], [], []>} : vector<4x256xbf16>, vector<256x256xbf16>, vector<4x256xf32> -> vector<4x256xf32>
    %c0_30 = arith.constant 0 : index
    %c0_31 = arith.constant 0 : index
    %c0_32 = arith.constant 0 : index
    %120 = vector.load %arg4[%c0_30, %c0_31, %c0_32] : memref<1x4x256xf32, #tpu.memory_space<vmem>>, vector<1x4x256xf32>
    %121 = vector.shape_cast %120 : vector<1x4x256xf32> to vector<4x256xf32>
    %122 = vector.shape_cast %119 : vector<4x256xf32> to vector<1x4x256xf32>
    tpu.vector_store %arg4[%c0_30, %c0_31, %c0_32], %122 {strides = array<i32>} : memref<1x4x256xf32, #tpu.memory_space<vmem>>, vector<1x4x256xf32>,
    return
  }
  func.func @transform_0(%arg0: i32, %arg1: i32) -> i32 {
    %c0_i32 = arith.constant 0 : i32
    %c0_i32_0 = arith.constant 0 : i32
    return %c0_i32 : i32
  }
  func.func @transform_1(%arg0: i32, %arg1: i32) -> (i32, i32, i32) {
    %c0_i32 = arith.constant 0 : i32
    %c0_i32_0 = arith.constant 0 : i32
    %c0_i32_1 = arith.constant 0 : i32
    return %arg0, %c0_i32, %c0_i32_0 : i32, i32, i32
  }
  func.func @transform_2(%arg0: i32, %arg1: i32) -> (i32, i32, i32) {
    %c0_i32 = arith.constant 0 : i32
    %c0_i32_0 = arith.constant 0 : i32
    return %arg0, %c0_i32, %arg1 : i32, i32, i32
  }
}

</mosaic_0001>

<llo_original>
// kernel: tpu_custom_call.1
$region0: #{tpu_custom_call.1}
  #allocation0 [shape = 'u32[]', space=smem, size = 0x4, offset = 0x4, fixed_abs, tag = 'smem constant byte address 0x4 - core index']
  #allocation1 [shape = 'u32[144,128]{1,0:T(1,128)}', space=vmem, size = 0x12000, scoped, tag = 'internal scratch']
  %s0 = inlined_call_operand.hbm [shape: f32[4], index: 0, kind: input, shape index: {}]
  %s1 = inlined_call_operand.hbm [shape: f32[2,4,256], index: 1, kind: input, shape index: {}]
  %s2 = inlined_call_operand.hbm [shape: f32[2,4,256], index: 2, kind: output, shape index: {}]
  %s3 = sld [smem:[#allocation0]]
  $region49: #{tpu_custom_call.1} parent=0
    _
  %s5 = ssub.s32 1, %s3
  %s6 = scalar_select 0, %s5, %s3
  $region1: #{tpu_custom_call.1} parent=0
    #allocation2 [shape = 'u8[512]{0}', space=smem, size = 0x200, scoped, tag = 'input window, operand 0, single buffered']
    #allocation3 [shape = 's32[2]{0}', space=sflag, size = 0x8, scoped, tag = 'scoped memory for tpu_custom_call.1']
    #allocation4 [shape = 's32[2]{0}', space=sflag, size = 0x8, scoped, tag = 'scoped memory for tpu_custom_call.1']
    #allocation5 [shape = 's32[2]{0}', space=sflag, size = 0x8, scoped, tag = 'scoped memory for tpu_custom_call.1']
    #allocation6 [shape = 'u8[8192]{0}', space=vmem, size = 0x2000, scoped, tag = 'input window, operand 1']
    #allocation7 [shape = 'u8[8192]{0}', space=vmem, size = 0x2000, scoped, tag = 'output window, operand 0']
    %7 = vsyncpa [#allocation5], 0
    %8 = vsyncpa [#allocation3], 0
    %s9 = scalar_lea.sflag [#allocation3], 1
    %10 = vsyncpa %s9, 0
    %11 = vsyncpa [#allocation4], 0
    %s12 = scalar_lea.sflag [#allocation4], 1
    %13 = vsyncpa %s12, 0
    loop: start=0, step=1, limit=4
    $region2: #{tpu_custom_call.1} parent=1 // loop_pre_header
      _
    $region3: #{tpu_custom_call.1} parent=1 // loop_header
      %s15 = sphi 0, %s19
      %p16 = scmp.ge.s32.totalorder %s15, 4
      %s22 = sphi 0, %s34
      %s23 = sphi 0, %s30
      %s24 = sphi 0, %s22
      %s25 = sphi 0, %s23
      %s26 = sphi 0, %s24
      %s27 = sphi 0, %s25
      %s35 = sphi 0, %s35
      %s37 = sphi 0, %s35
      %s38 = sphi 0, %s37
      %s52 = sphi 0, %s38
      %s58 = sphi 0, %s60
      %s61 = sphi 0, %s58
      %s62 = sphi 0, %s61
      %s78 = sphi 0, %s62
      %s86 = sphi 0, %s88
      %s89 = sphi 0, %s86
      %s90 = sphi 0, %s89
      %s106 = sphi 0, %s90
    $region4: #{tpu_custom_call.1} parent=1 // loop_header_branch
      %18 = sbr.rel (%p16) target = $region8
    $region5: #{tpu_custom_call.1} parent=1 // loop_body
      %s20 = ssub.s32 %s15, 1
      %s21 = ssub.s32 %s15, 2
      %s28 = sadd.s32 1, %s23
      %p29 = scmp.ge.s32.totalorder %s28, 1
      %s30 = scalar_select %p29, 0, %s28
      %s31 = sadd.s32 1, %s22
      %s32 = scalar_select %p29, %s31, %s22
      %p33 = scmp.ge.s32.totalorder %s32, 2
      %s34 = scalar_select %p33, 0, %s32
      %s36 = sadd.s32 %s35, 1
      %p39 = scmp.eq.s32.totalorder %s15, 1
      %p40 = scmp.ne.s32.totalorder %s35, %s37
      %p41 = scmp.eq.s32.totalorder %s15, 0
      %p42 = por %p40, %p41
      %p43 = scmp.ne.s32.totalorder %s35, %s37
      %p44 = scmp.eq.s32.totalorder %s20, 1
      %p45 = por %p43, %p44
      %p46 = scmp.ne.s32.totalorder %s37, %s38
      %p47 = scmp.eq.s32.totalorder %s20, 0
      %p48 = por %p46, %p47
      %p49 = scmp.ne.s32.totalorder %s37, %s38
      %p50 = scmp.eq.s32.totalorder %s21, 1
      %p51 = por %p49, %p50
      %p53 = scmp.ne.s32.totalorder %s38, %s52
      %p54 = scmp.eq.s32.totalorder %s21, 0
      %p55 = por %p53, %p54
      %s56 = ssub.s32 %s22, %s34
      %p57 = scmp.eq.s32.totalorder %s56, 0
      %s59 = sadd.s32 %s58, 1
      %s60 = scalar_select %p57, %s58, %s59
      %p63 = pneg %p57
      %p64 = scmp.eq.s32.totalorder %s15, 1
      %p65 = por %p63, %p64
      %p66 = scmp.ne.s32.totalorder %s58, %s61
      %p67 = scmp.eq.s32.totalorder %s15, 0
      %p68 = por %p66, %p67
      %p69 = scmp.ne.s32.totalorder %s58, %s61
      %p70 = scmp.eq.s32.totalorder %s20, 1
      %p71 = por %p69, %p70
      %p72 = scmp.ne.s32.totalorder %s61, %s62
      %p73 = scmp.eq.s32.totalorder %s20, 0
      %p74 = por %p72, %p73
      %p75 = scmp.ne.s32.totalorder %s61, %s62
      %p76 = scmp.eq.s32.totalorder %s21, 1
      %p77 = por %p75, %p76
      %p79 = scmp.ne.s32.totalorder %s62, %s78
      %p80 = scmp.eq.s32.totalorder %s21, 0
      %p81 = por %p79, %p80
      %s82 = ssub.s32 %s22, %s34
      %s83 = ssub.s32 %s23, %s30
      %s84 = sor.u32 %s82, %s83
      %p85 = scmp.eq.s32.totalorder %s84, 0
      %s87 = sadd.s32 %s86, 1
      %s88 = scalar_select %p85, %s86, %s87
      %p91 = pneg %p85
      %p92 = scmp.eq.s32.totalorder %s15, 1
      %p93 = por %p91, %p92
      %p94 = scmp.ne.s32.totalorder %s86, %s89
      %p95 = scmp.eq.s32.totalorder %s15, 0
      %p96 = por %p94, %p95
      %p97 = scmp.ne.s32.totalorder %s86, %s89
      %p98 = scmp.eq.s32.totalorder %s20, 1
      %p99 = por %p97, %p98
      %p100 = scmp.ne.s32.totalorder %s89, %s90
      %p101 = scmp.eq.s32.totalorder %s20, 0
      %p102 = por %p100, %p101
      %p103 = scmp.ne.s32.totalorder %s89, %s90
      %p104 = scmp.eq.s32.totalorder %s21, 1
      %p105 = por %p103, %p104
      %p107 = scmp.ne.s32.totalorder %s90, %s106
      %p108 = scmp.eq.s32.totalorder %s21, 0
      %p109 = por %p107, %p108
      %p110 = scmp.le.s32.totalorder 1, %s15
      %p111 = scmp.lt.s32.totalorder %s15, 3
      %p112 = pnand %p110, %p111
      %p113 = pneg %p112
      // Predicated region
      $region9: #{tpu_custom_call.1} parent=5 // pred_check
        _
      $region10: #{tpu_custom_call.1} parent=5 // pred_check_branch
        %115 = sbr.rel (%p112) target = $region12
      $region11: #{tpu_custom_call.1} parent=5 // pred_region
        %s116 = ssub.s32 %s15, 1
        // Predicated region
        $region13: #{tpu_custom_call.1} parent=11 // pred_check
          %p117 = pneg %p48
        $region14: #{tpu_custom_call.1} parent=11 // pred_check_branch
          %119 = sbr.rel (%p117) target = $region16
        $region15: #{tpu_custom_call.1} parent=11 // pred_region
          %s121 = ssub.s32 16, 16
          %122 = vsyncadd [#allocation5], %s121
          %125 = dma.hbm_to_smem %s0, 16, [#allocation2], [#allocation5]
        $region16: #{tpu_custom_call.1} parent=11 // pred_fallthru
          _
      $region12: #{tpu_custom_call.1} parent=5 // pred_fallthru
        _
      %p126 = scmp.lt.s32.totalorder %s15, 2
      // Predicated region
      $region17: #{tpu_custom_call.1} parent=5 // pred_check
        %p127 = pneg %p126
      $region18: #{tpu_custom_call.1} parent=5 // pred_check_branch
        %129 = sbr.rel (%p127) target = $region20
      $region19: #{tpu_custom_call.1} parent=5 // pred_region
        // Predicated region
        $region21: #{tpu_custom_call.1} parent=19 // pred_check
          %p130 = pneg %p68
        $region22: #{tpu_custom_call.1} parent=19 // pred_check_branch
          %132 = sbr.rel (%p130) target = $region24
        $region23: #{tpu_custom_call.1} parent=19 // pred_region
          %s133 = sand.u32 %s58, 1
          %s134 = scalar_lea.sflag [#allocation3], %s133
          %s135 = sand.u32 %s58, 1
          %s136 = smul.addr %s135, 8
          %s137 = scalar_lea.vmem [#allocation6], %s136
          %s139 = ssub.s32 128, 128
          %140 = vsyncadd %s134, %s139
          %s141 = smul.addr %s22, 2
          %s142 = smul.addr %s141, 64
          %s143 = scalar_lea.hbm %s1, %s142
          %s145 = sshll.u32 %s137, 4
          %s146 = int_to_ptr.vmem [resolvable:$true] %s145
          %148 = dma.hbm_to_vmem [thread:$0]  %s143, 128, %s146, %s134
        $region24: #{tpu_custom_call.1} parent=19 // pred_fallthru
          _
      $region20: #{tpu_custom_call.1} parent=5 // pred_fallthru
        _
      %p149 = scmp.le.s32.totalorder 1, %s15
      %p150 = scmp.lt.s32.totalorder %s15, 3
      %p151 = pnand %p149, %p150
      %p152 = pneg %p151
      // Predicated region
      $region25: #{tpu_custom_call.1} parent=5 // pred_check
        _
      $region26: #{tpu_custom_call.1} parent=5 // pred_check_branch
        %154 = sbr.rel (%p151) target = $region28
      $region27: #{tpu_custom_call.1} parent=5 // pred_region
        %s155 = ssub.s32 %s15, 1
        // Predicated region
        $region29: #{tpu_custom_call.1} parent=27 // pred_check
          %p156 = pneg %p48
        $region30: #{tpu_custom_call.1} parent=27 // pred_check_branch
          %158 = sbr.rel (%p156) target = $region32
        $region31: #{tpu_custom_call.1} parent=27 // pred_region
          %159 = dma.done [#allocation5], 16
        $region32: #{tpu_custom_call.1} parent=27 // pred_fallthru
          _
        %s160 = sand.u32 %s61, 1
        %s161 = scalar_lea.sflag [#allocation3], %s160
        %s162 = sand.u32 %s61, 1
        %s163 = smul.addr %s162, 8
        %s164 = scalar_lea.vmem [#allocation6], %s163
        // Predicated region
        $region33: #{tpu_custom_call.1} parent=27 // pred_check
          %p165 = pneg %p74
        $region34: #{tpu_custom_call.1} parent=27 // pred_check_branch
          %167 = sbr.rel (%p165) target = $region36
        $region35: #{tpu_custom_call.1} parent=27 // pred_region
          %168 = dma.done %s161, 128
        $region36: #{tpu_custom_call.1} parent=27 // pred_fallthru
          _
        %169 = sfence
        %p170 = pneg %p48
        %p171 = pneg %p45
        %s172 = sand.u32 %s61, 1
        %s173 = scalar_lea.sflag [#allocation3], %s172
        %s174 = sand.u32 %s61, 1
        %s175 = smul.addr %s174, 8
        %s176 = scalar_lea.vmem [#allocation6], %s175
        %p177 = pneg %p74
        %p178 = pneg %p71
        %p179 = pneg %p102
        %p180 = pneg %p99
        %s181 = sand.u32 %s89, 1
        %s182 = scalar_lea.sflag [#allocation4], %s181
        %s183 = sand.u32 %s89, 1
        %s184 = smul.addr %s183, 8
        %s185 = scalar_lea.vmem [#allocation7], %s184
        %s186 = smul.u32 2, %s25
        %s187 = smul.u32 %s24, 2
        %s188 = sld [smem:[#allocation2 + %s187]]
        %s189 = sadd.s32 %s187, 1
        %s190 = sld [smem:[#allocation2 + %s189]]
        %s191 = smul.f32 %s188, %s190
        %s192 = ssub.f32 1.0, %s191
        %v193 = vstv %s192
        %v194 = vrcp.pop %v193
        %s195 = vtos %v194
        %s196 = smul.u32 %s25, 256
        %v197 = vlaneseq
        %v198 = vand.u32 %v197, 127
        %v199 = vadd.s32 %v198, 128
        %v200 = vstv %s196
        %v201 = vadd.s32 %v200, %v198
        %v202 = vadd.s32 %v200, %v199
        %v203 = vcvt.s32.f32 %v201
        %v204 = vcvt.s32.f32 %v202
        %v205 = vadd.f32 %v203, 0.5
        %v206 = vadd.f32 %v204, 0.5
        %v207 = vrcp.pop 16.0
        %v208 = vmul.f32 %v205, %v207
        %v209 = vmul.f32 %v206, %v207
        %v210 = vfloor.f32 %v208
        %v211 = vfloor.f32 %v209
        %v212 = vmul.f32 %v210, 16.0
        %v213 = vmul.f32 %v211, 16.0
        %v214 = vsub.f32 %v203, %v212
        %v215 = vsub.f32 %v204, %v213
        %v216 = vstv %s188
        %v217 = vmul.f32 %v216, %v210
        %v218 = vmul.f32 %v216, %v211
        %v219 = vsub.f32 %v214, %v217
        %v220 = vsub.f32 %v215, %v218
        %v221 = vstv %s195
        %v222 = vmul.f32 %v219, %v221
        %v223 = vmul.f32 %v220, %v221
        %v224 = vstv %s190
        %v225 = vmul.f32 %v224, %v214
        %v226 = vmul.f32 %v224, %v215
        %v227 = vsub.f32 %v210, %v225
        %v228 = vsub.f32 %v211, %v226
        %v229 = vmul.f32 %v227, %v221
        %v230 = vmul.f32 %v228, %v221
        %v231 = vfloor.f32 %v222
        %v232 = vfloor.f32 %v223
        %v233 = vfloor.f32 %v229
        %v234 = vfloor.f32 %v230
        %v235 = vsub.f32 %v222, %v231
        %v236 = vsub.f32 %v223, %v232
        %v237 = vsub.f32 %v229, %v233
        %v238 = vsub.f32 %v230, %v234
        %vm239 = vcmp.ge.f32.partialorder %v231, 0.0
        %vm240 = vcmp.ge.f32.partialorder %v232, 0.0
        %vm241 = vcmp.le.f32.partialorder %v231, 15.0
        %vm242 = vcmp.le.f32.partialorder %v232, 15.0
        %vm243 = vmand %vm239, %vm241
        %vm244 = vmand %vm240, %vm242
        %vm245 = vcmp.ge.f32.partialorder %v231, -1.0
        %vm246 = vcmp.ge.f32.partialorder %v232, -1.0
        %vm247 = vcmp.le.f32.partialorder %v231, 14.0
        %vm248 = vcmp.le.f32.partialorder %v232, 14.0
        %vm249 = vmand %vm245, %vm247
        %vm250 = vmand %vm246, %vm248
        %vm251 = vcmp.ge.f32.partialorder %v233, 0.0
        %vm252 = vcmp.ge.f32.partialorder %v234, 0.0
        %vm253 = vcmp.le.f32.partialorder %v233, 15.0
        %vm254 = vcmp.le.f32.partialorder %v234, 15.0
        %vm255 = vmand %vm251, %vm253
        %vm256 = vmand %vm252, %vm254
        %vm257 = vcmp.ge.f32.partialorder %v233, -1.0
        %vm258 = vcmp.ge.f32.partialorder %v234, -1.0
        %vm259 = vcmp.le.f32.partialorder %v233, 14.0
        %vm260 = vcmp.le.f32.partialorder %v234, 14.0
        %vm261 = vmand %vm257, %vm259
        %vm262 = vmand %vm258, %vm260
        %vm263 = vmand %vm243, %vm255
        %vm264 = vmand %vm244, %vm256
        %v265 = vsub.f32 1.0, %v235
        %v266 = vsub.f32 1.0, %v236
        %v267 = vsub.f32 1.0, %v237
        %v268 = vsub.f32 1.0, %v238
        %v269 = vmul.f32 %v265, %v267
        %v270 = vmul.f32 %v266, %v268
        %v271 = vsel %vm263, %v269, 0.0
        %v272 = vsel %vm264, %v270, 0.0
        %vm273 = vmand %vm249, %vm255
        %vm274 = vmand %vm250, %vm256
        %v275 = vmul.f32 %v235, %v267
        %v276 = vmul.f32 %v236, %v268
        %v277 = vsel %vm273, %v275, 0.0
        %v278 = vsel %vm274, %v276, 0.0
        %vm279 = vmand %vm243, %vm261
        %vm280 = vmand %vm244, %vm262
        %v281 = vmul.f32 %v265, %v237
        %v282 = vmul.f32 %v266, %v238
        %v283 = vsel %vm279, %v281, 0.0
        %v284 = vsel %vm280, %v282, 0.0
        %vm285 = vmand %vm249, %vm261
        %vm286 = vmand %vm250, %vm262
        %v287 = vmul.f32 %v235, %v237
        %v288 = vmul.f32 %v236, %v238
        %v289 = vsel %vm285, %v287, 0.0
        %v290 = vsel %vm286, %v288, 0.0
        %v291 = vmul.f32 %v233, 16.0
        %v292 = vmul.f32 %v234, 16.0
        %v293 = vadd.f32 %v291, %v231
        %v294 = vadd.f32 %v292, %v232
        %v295 = vcvt.f32.s32.to.zero.pseudo %v293
        %v296 = vcvt.f32.s32.to.zero.pseudo %v294
        %v297 = vlaneseq
        %v298 = vshrl.u32 %v297, 7
        %v299 = vadd.s32 %v298, 8
        %v300 = vadd.s32 %v298, 16
        %v301 = vadd.s32 %v298, 24
        %v302 = vadd.s32 %v298, 32
        %v303 = vadd.s32 %v298, 40
        %v304 = vadd.s32 %v298, 48
        %v305 = vadd.s32 %v298, 56
        %v306 = vadd.s32 %v298, 64
        %v307 = vadd.s32 %v298, 72
        %v308 = vadd.s32 %v298, 80
        %v309 = vadd.s32 %v298, 88
        %v310 = vadd.s32 %v298, 96
        %v311 = vadd.s32 %v298, 104
        %v312 = vadd.s32 %v298, 112
        %v313 = vadd.s32 %v298, 120
        %v314 = vadd.s32 %v298, 128
        %v315 = vadd.s32 %v298, 136
        %v316 = vadd.s32 %v298, 144
        %v317 = vadd.s32 %v298, 152
        %v318 = vadd.s32 %v298, 160
        %v319 = vadd.s32 %v298, 168
        %v320 = vadd.s32 %v298, 176
        %v321 = vadd.s32 %v298, 184
        %v322 = vadd.s32 %v298, 192
        %v323 = vadd.s32 %v298, 200
        %v324 = vadd.s32 %v298, 208
        %v325 = vadd.s32 %v298, 216
        %v326 = vadd.s32 %v298, 224
        %v327 = vadd.s32 %v298, 232
        %v328 = vadd.s32 %v298, 240
        %v329 = vadd.s32 %v298, 248
        %v330 = vsub.s32 %v298, %v295
        %v331 = vsub.s32 %v298, %v296
        %v332 = vsub.s32 %v299, %v295
        %v333 = vsub.s32 %v299, %v296
        %v334 = vsub.s32 %v300, %v295
        %v335 = vsub.s32 %v300, %v296
        %v336 = vsub.s32 %v301, %v295
        %v337 = vsub.s32 %v301, %v296
        %v338 = vsub.s32 %v302, %v295
        %v339 = vsub.s32 %v302, %v296
        %v340 = vsub.s32 %v303, %v295
        %v341 = vsub.s32 %v303, %v296
        %v342 = vsub.s32 %v304, %v295
        %v343 = vsub.s32 %v304, %v296
        %v344 = vsub.s32 %v305, %v295
        %v345 = vsub.s32 %v305, %v296
        %v346 = vsub.s32 %v306, %v295
        %v347 = vsub.s32 %v306, %v296
        %v348 = vsub.s32 %v307, %v295
        %v349 = vsub.s32 %v307, %v296
        %v350 = vsub.s32 %v308, %v295
        %v351 = vsub.s32 %v308, %v296
        %v352 = vsub.s32 %v309, %v295
        %v353 = vsub.s32 %v309, %v296
        %v354 = vsub.s32 %v310, %v295
        %v355 = vsub.s32 %v310, %v296
        %v356 = vsub.s32 %v311, %v295
        %v357 = vsub.s32 %v311, %v296
        %v358 = vsub.s32 %v312, %v295
        %v359 = vsub.s32 %v312, %v296
        %v360 = vsub.s32 %v313, %v295
        %v361 = vsub.s32 %v313, %v296
        %v362 = vsub.s32 %v314, %v295
        %v363 = vsub.s32 %v314, %v296
        %v364 = vsub.s32 %v315, %v295
        %v365 = vsub.s32 %v315, %v296
        %v366 = vsub.s32 %v316, %v295
        %v367 = vsub.s32 %v316, %v296
        %v368 = vsub.s32 %v317, %v295
        %v369 = vsub.s32 %v317, %v296
        %v370 = vsub.s32 %v318, %v295
        %v371 = vsub.s32 %v318, %v296
        %v372 = vsub.s32 %v319, %v295
        %v373 = vsub.s32 %v319, %v296
        %v374 = vsub.s32 %v320, %v295
        %v375 = vsub.s32 %v320, %v296
        %v376 = vsub.s32 %v321, %v295
        %v377 = vsub.s32 %v321, %v296
        %v378 = vsub.s32 %v322, %v295
        %v379 = vsub.s32 %v322, %v296
        %v380 = vsub.s32 %v323, %v295
        %v381 = vsub.s32 %v323, %v296
        %v382 = vsub.s32 %v324, %v295
        %v383 = vsub.s32 %v324, %v296
        %v384 = vsub.s32 %v325, %v295
        %v385 = vsub.s32 %v325, %v296
        %v386 = vsub.s32 %v326, %v295
        %v387 = vsub.s32 %v326, %v296
        %v388 = vsub.s32 %v327, %v295
        %v389 = vsub.s32 %v327, %v296
        %v390 = vsub.s32 %v328, %v295
        %v391 = vsub.s32 %v328, %v296
        %v392 = vsub.s32 %v329, %v295
        %v393 = vsub.s32 %v329, %v296
        %vm394 = vcmp.eq.s32.totalorder %v330, 0
        %vm395 = vcmp.eq.s32.totalorder %v331, 0
        %vm396 = vcmp.eq.s32.totalorder %v332, 0
        %vm397 = vcmp.eq.s32.totalorder %v333, 0
        %vm398 = vcmp.eq.s32.totalorder %v334, 0
        %vm399 = vcmp.eq.s32.totalorder %v335, 0
        %vm400 = vcmp.eq.s32.totalorder %v336, 0
        %vm401 = vcmp.eq.s32.totalorder %v337, 0
        %vm402 = vcmp.eq.s32.totalorder %v338, 0
        %vm403 = vcmp.eq.s32.totalorder %v339, 0
        %vm404 = vcmp.eq.s32.totalorder %v340, 0
        %vm405 = vcmp.eq.s32.totalorder %v341, 0
        %vm406 = vcmp.eq.s32.totalorder %v342, 0
        %vm407 = vcmp.eq.s32.totalorder %v343, 0
        %vm408 = vcmp.eq.s32.totalorder %v344, 0
        %vm409 = vcmp.eq.s32.totalorder %v345, 0
        %vm410 = vcmp.eq.s32.totalorder %v346, 0
        %vm411 = vcmp.eq.s32.totalorder %v347, 0
        %vm412 = vcmp.eq.s32.totalorder %v348, 0
        %vm413 = vcmp.eq.s32.totalorder %v349, 0
        %vm414 = vcmp.eq.s32.totalorder %v350, 0
        %vm415 = vcmp.eq.s32.totalorder %v351, 0
        %vm416 = vcmp.eq.s32.totalorder %v352, 0
        %vm417 = vcmp.eq.s32.totalorder %v353, 0
        %vm418 = vcmp.eq.s32.totalorder %v354, 0
        %vm419 = vcmp.eq.s32.totalorder %v355, 0
        %vm420 = vcmp.eq.s32.totalorder %v356, 0
        %vm421 = vcmp.eq.s32.totalorder %v357, 0
        %vm422 = vcmp.eq.s32.totalorder %v358, 0
        %vm423 = vcmp.eq.s32.totalorder %v359, 0
        %vm424 = vcmp.eq.s32.totalorder %v360, 0
        %vm425 = vcmp.eq.s32.totalorder %v361, 0
        %vm426 = vcmp.eq.s32.totalorder %v362, 0
        %vm427 = vcmp.eq.s32.totalorder %v363, 0
        %vm428 = vcmp.eq.s32.totalorder %v364, 0
        %vm429 = vcmp.eq.s32.totalorder %v365, 0
        %vm430 = vcmp.eq.s32.totalorder %v366, 0
        %vm431 = vcmp.eq.s32.totalorder %v367, 0
        %vm432 = vcmp.eq.s32.totalorder %v368, 0
        %vm433 = vcmp.eq.s32.totalorder %v369, 0
        %vm434 = vcmp.eq.s32.totalorder %v370, 0
        %vm435 = vcmp.eq.s32.totalorder %v371, 0
        %vm436 = vcmp.eq.s32.totalorder %v372, 0
        %vm437 = vcmp.eq.s32.totalorder %v373, 0
        %vm438 = vcmp.eq.s32.totalorder %v374, 0
        %vm439 = vcmp.eq.s32.totalorder %v375, 0
        %vm440 = vcmp.eq.s32.totalorder %v376, 0
        %vm441 = vcmp.eq.s32.totalorder %v377, 0
        %vm442 = vcmp.eq.s32.totalorder %v378, 0
        %vm443 = vcmp.eq.s32.totalorder %v379, 0
        %vm444 = vcmp.eq.s32.totalorder %v380, 0
        %vm445 = vcmp.eq.s32.totalorder %v381, 0
        %vm446 = vcmp.eq.s32.totalorder %v382, 0
        %vm447 = vcmp.eq.s32.totalorder %v383, 0
        %vm448 = vcmp.eq.s32.totalorder %v384, 0
        %vm449 = vcmp.eq.s32.totalorder %v385, 0
        %vm450 = vcmp.eq.s32.totalorder %v386, 0
        %vm451 = vcmp.eq.s32.totalorder %v387, 0
        %vm452 = vcmp.eq.s32.totalorder %v388, 0
        %vm453 = vcmp.eq.s32.totalorder %v389, 0
        %vm454 = vcmp.eq.s32.totalorder %v390, 0
        %vm455 = vcmp.eq.s32.totalorder %v391, 0
        %vm456 = vcmp.eq.s32.totalorder %v392, 0
        %vm457 = vcmp.eq.s32.totalorder %v393, 0
        %v458 = vsel %vm394, %v271, 0.0
        %v459 = vsel %vm395, %v272, 0.0
        %v460 = vsel %vm396, %v271, 0.0
        %v461 = vsel %vm397, %v272, 0.0
        %v462 = vsel %vm398, %v271, 0.0
        %v463 = vsel %vm399, %v272, 0.0
        %v464 = vsel %vm400, %v271, 0.0
        %v465 = vsel %vm401, %v272, 0.0
        %v466 = vsel %vm402, %v271, 0.0
        %v467 = vsel %vm403, %v272, 0.0
        %v468 = vsel %vm404, %v271, 0.0
        %v469 = vsel %vm405, %v272, 0.0
        %v470 = vsel %vm406, %v271, 0.0
        %v471 = vsel %vm407, %v272, 0.0
        %v472 = vsel %vm408, %v271, 0.0
        %v473 = vsel %vm409, %v272, 0.0
        %v474 = vsel %vm410, %v271, 0.0
        %v475 = vsel %vm411, %v272, 0.0
        %v476 = vsel %vm412, %v271, 0.0
        %v477 = vsel %vm413, %v272, 0.0
        %v478 = vsel %vm414, %v271, 0.0
        %v479 = vsel %vm415, %v272, 0.0
        %v480 = vsel %vm416, %v271, 0.0
        %v481 = vsel %vm417, %v272, 0.0
        %v482 = vsel %vm418, %v271, 0.0
        %v483 = vsel %vm419, %v272, 0.0
        %v484 = vsel %vm420, %v271, 0.0
        %v485 = vsel %vm421, %v272, 0.0
        %v486 = vsel %vm422, %v271, 0.0
        %v487 = vsel %vm423, %v272, 0.0
        %v488 = vsel %vm424, %v271, 0.0
        %v489 = vsel %vm425, %v272, 0.0
        %v490 = vsel %vm426, %v271, 0.0
        %v491 = vsel %vm427, %v272, 0.0
        %v492 = vsel %vm428, %v271, 0.0
        %v493 = vsel %vm429, %v272, 0.0
        %v494 = vsel %vm430, %v271, 0.0
        %v495 = vsel %vm431, %v272, 0.0
        %v496 = vsel %vm432, %v271, 0.0
        %v497 = vsel %vm433, %v272, 0.0
        %v498 = vsel %vm434, %v271, 0.0
        %v499 = vsel %vm435, %v272, 0.0
        %v500 = vsel %vm436, %v271, 0.0
        %v501 = vsel %vm437, %v272, 0.0
        %v502 = vsel %vm438, %v271, 0.0
        %v503 = vsel %vm439, %v272, 0.0
        %v504 = vsel %vm440, %v271, 0.0
        %v505 = vsel %vm441, %v272, 0.0
        %v506 = vsel %vm442, %v271, 0.0
        %v507 = vsel %vm443, %v272, 0.0
        %v508 = vsel %vm444, %v271, 0.0
        %v509 = vsel %vm445, %v272, 0.0
        %v510 = vsel %vm446, %v271, 0.0
        %v511 = vsel %vm447, %v272, 0.0
        %v512 = vsel %vm448, %v271, 0.0
        %v513 = vsel %vm449, %v272, 0.0
        %v514 = vsel %vm450, %v271, 0.0
        %v515 = vsel %vm451, %v272, 0.0
        %v516 = vsel %vm452, %v271, 0.0
        %v517 = vsel %vm453, %v272, 0.0
        %v518 = vsel %vm454, %v271, 0.0
        %v519 = vsel %vm455, %v272, 0.0
        %v520 = vsel %vm456, %v271, 0.0
        %v521 = vsel %vm457, %v272, 0.0
        %vm522 = vcmp.eq.s32.totalorder %v330, 1
        %vm523 = vcmp.eq.s32.totalorder %v331, 1
        %vm524 = vcmp.eq.s32.totalorder %v332, 1
        %vm525 = vcmp.eq.s32.totalorder %v333, 1
        %vm526 = vcmp.eq.s32.totalorder %v334, 1
        %vm527 = vcmp.eq.s32.totalorder %v335, 1
        %vm528 = vcmp.eq.s32.totalorder %v336, 1
        %vm529 = vcmp.eq.s32.totalorder %v337, 1
        %vm530 = vcmp.eq.s32.totalorder %v338, 1
        %vm531 = vcmp.eq.s32.totalorder %v339, 1
        %vm532 = vcmp.eq.s32.totalorder %v340, 1
        %vm533 = vcmp.eq.s32.totalorder %v341, 1
        %vm534 = vcmp.eq.s32.totalorder %v342, 1
        %vm535 = vcmp.eq.s32.totalorder %v343, 1
        %vm536 = vcmp.eq.s32.totalorder %v344, 1
        %vm537 = vcmp.eq.s32.totalorder %v345, 1
        %vm538 = vcmp.eq.s32.totalorder %v346, 1
        %vm539 = vcmp.eq.s32.totalorder %v347, 1
        %vm540 = vcmp.eq.s32.totalorder %v348, 1
        %vm541 = vcmp.eq.s32.totalorder %v349, 1
        %vm542 = vcmp.eq.s32.totalorder %v350, 1
        %vm543 = vcmp.eq.s32.totalorder %v351, 1
        %vm544 = vcmp.eq.s32.totalorder %v352, 1
        %vm545 = vcmp.eq.s32.totalorder %v353, 1
        %vm546 = vcmp.eq.s32.totalorder %v354, 1
        %vm547 = vcmp.eq.s32.totalorder %v355, 1
        %vm548 = vcmp.eq.s32.totalorder %v356, 1
        %vm549 = vcmp.eq.s32.totalorder %v357, 1
        %vm550 = vcmp.eq.s32.totalorder %v358, 1
        %vm551 = vcmp.eq.s32.totalorder %v359, 1
        %vm552 = vcmp.eq.s32.totalorder %v360, 1
        %vm553 = vcmp.eq.s32.totalorder %v361, 1
        %vm554 = vcmp.eq.s32.totalorder %v362, 1
        %vm555 = vcmp.eq.s32.totalorder %v363, 1
        %vm556 = vcmp.eq.s32.totalorder %v364, 1
        %vm557 = vcmp.eq.s32.totalorder %v365, 1
        %vm558 = vcmp.eq.s32.totalorder %v366, 1
        %vm559 = vcmp.eq.s32.totalorder %v367, 1
        %vm560 = vcmp.eq.s32.totalorder %v368, 1
        %vm561 = vcmp.eq.s32.totalorder %v369, 1
        %vm562 = vcmp.eq.s32.totalorder %v370, 1
        %vm563 = vcmp.eq.s32.totalorder %v371, 1
        %vm564 = vcmp.eq.s32.totalorder %v372, 1
        %vm565 = vcmp.eq.s32.totalorder %v373, 1
        %vm566 = vcmp.eq.s32.totalorder %v374, 1
        %vm567 = vcmp.eq.s32.totalorder %v375, 1
        %vm568 = vcmp.eq.s32.totalorder %v376, 1
        %vm569 = vcmp.eq.s32.totalorder %v377, 1
        %vm570 = vcmp.eq.s32.totalorder %v378, 1
        %vm571 = vcmp.eq.s32.totalorder %v379, 1
        %vm572 = vcmp.eq.s32.totalorder %v380, 1
        %vm573 = vcmp.eq.s32.totalorder %v381, 1
        %vm574 = vcmp.eq.s32.totalorder %v382, 1
        %vm575 = vcmp.eq.s32.totalorder %v383, 1
        %vm576 = vcmp.eq.s32.totalorder %v384, 1
        %vm577 = vcmp.eq.s32.totalorder %v385, 1
        %vm578 = vcmp.eq.s32.totalorder %v386, 1
        %vm579 = vcmp.eq.s32.totalorder %v387, 1
        %vm580 = vcmp.eq.s32.totalorder %v388, 1
        %vm581 = vcmp.eq.s32.totalorder %v389, 1
        %vm582 = vcmp.eq.s32.totalorder %v390, 1
        %vm583 = vcmp.eq.s32.totalorder %v391, 1
        %vm584 = vcmp.eq.s32.totalorder %v392, 1
        %vm585 = vcmp.eq.s32.totalorder %v393, 1
        %v586 = vsel %vm522, %v277, 0.0
        %v587 = vsel %vm523, %v278, 0.0
        %v588 = vsel %vm524, %v277, 0.0
        %v589 = vsel %vm525, %v278, 0.0
        %v590 = vsel %vm526, %v277, 0.0
        %v591 = vsel %vm527, %v278, 0.0
        %v592 = vsel %vm528, %v277, 0.0
        %v593 = vsel %vm529, %v278, 0.0
        %v594 = vsel %vm530, %v277, 0.0
        %v595 = vsel %vm531, %v278, 0.0
        %v596 = vsel %vm532, %v277, 0.0
        %v597 = vsel %vm533, %v278, 0.0
        %v598 = vsel %vm534, %v277, 0.0
        %v599 = vsel %vm535, %v278, 0.0
        %v600 = vsel %vm536, %v277, 0.0
        %v601 = vsel %vm537, %v278, 0.0
        %v602 = vsel %vm538, %v277, 0.0
        %v603 = vsel %vm539, %v278, 0.0
        %v604 = vsel %vm540, %v277, 0.0
        %v605 = vsel %vm541, %v278, 0.0
        %v606 = vsel %vm542, %v277, 0.0
        %v607 = vsel %vm543, %v278, 0.0
        %v608 = vsel %vm544, %v277, 0.0
        %v609 = vsel %vm545, %v278, 0.0
        %v610 = vsel %vm546, %v277, 0.0
        %v611 = vsel %vm547, %v278, 0.0
        %v612 = vsel %vm548, %v277, 0.0
        %v613 = vsel %vm549, %v278, 0.0
        %v614 = vsel %vm550, %v277, 0.0
        %v615 = vsel %vm551, %v278, 0.0
        %v616 = vsel %vm552, %v277, 0.0
        %v617 = vsel %vm553, %v278, 0.0
        %v618 = vsel %vm554, %v277, 0.0
        %v619 = vsel %vm555, %v278, 0.0
        %v620 = vsel %vm556, %v277, 0.0
        %v621 = vsel %vm557, %v278, 0.0
        %v622 = vsel %vm558, %v277, 0.0
        %v623 = vsel %vm559, %v278, 0.0
        %v624 = vsel %vm560, %v277, 0.0
        %v625 = vsel %vm561, %v278, 0.0
        %v626 = vsel %vm562, %v277, 0.0
        %v627 = vsel %vm563, %v278, 0.0
        %v628 = vsel %vm564, %v277, 0.0
        %v629 = vsel %vm565, %v278, 0.0
        %v630 = vsel %vm566, %v277, 0.0
        %v631 = vsel %vm567, %v278, 0.0
        %v632 = vsel %vm568, %v277, 0.0
        %v633 = vsel %vm569, %v278, 0.0
        %v634 = vsel %vm570, %v277, 0.0
        %v635 = vsel %vm571, %v278, 0.0
        %v636 = vsel %vm572, %v277, 0.0
        %v637 = vsel %vm573, %v278, 0.0
        %v638 = vsel %vm574, %v277, 0.0
        %v639 = vsel %vm575, %v278, 0.0
        %v640 = vsel %vm576, %v277, 0.0
        %v641 = vsel %vm577, %v278, 0.0
        %v642 = vsel %vm578, %v277, 0.0
        %v643 = vsel %vm579, %v278, 0.0
        %v644 = vsel %vm580, %v277, 0.0
        %v645 = vsel %vm581, %v278, 0.0
        %v646 = vsel %vm582, %v277, 0.0
        %v647 = vsel %vm583, %v278, 0.0
        %v648 = vsel %vm584, %v277, 0.0
        %v649 = vsel %vm585, %v278, 0.0
        %v650 = vadd.f32 %v458, %v586
        %v651 = vadd.f32 %v459, %v587
        %v652 = vadd.f32 %v460, %v588
        %v653 = vadd.f32 %v461, %v589
        %v654 = vadd.f32 %v462, %v590
        %v655 = vadd.f32 %v463, %v591
        %v656 = vadd.f32 %v464, %v592
        %v657 = vadd.f32 %v465, %v593
        %v658 = vadd.f32 %v466, %v594
        %v659 = vadd.f32 %v467, %v595
        %v660 = vadd.f32 %v468, %v596
        %v661 = vadd.f32 %v469, %v597
        %v662 = vadd.f32 %v470, %v598
        %v663 = vadd.f32 %v471, %v599
        %v664 = vadd.f32 %v472, %v600
        %v665 = vadd.f32 %v473, %v601
        %v666 = vadd.f32 %v474, %v602
        %v667 = vadd.f32 %v475, %v603
        %v668 = vadd.f32 %v476, %v604
        %v669 = vadd.f32 %v477, %v605
        %v670 = vadd.f32 %v478, %v606
        %v671 = vadd.f32 %v479, %v607
        %v672 = vadd.f32 %v480, %v608
        %v673 = vadd.f32 %v481, %v609
        %v674 = vadd.f32 %v482, %v610
        %v675 = vadd.f32 %v483, %v611
        %v676 = vadd.f32 %v484, %v612
        %v677 = vadd.f32 %v485, %v613
        %v678 = vadd.f32 %v486, %v614
        %v679 = vadd.f32 %v487, %v615
        %v680 = vadd.f32 %v488, %v616
        %v681 = vadd.f32 %v489, %v617
        %v682 = vadd.f32 %v490, %v618
        %v683 = vadd.f32 %v491, %v619
        %v684 = vadd.f32 %v492, %v620
        %v685 = vadd.f32 %v493, %v621
        %v686 = vadd.f32 %v494, %v622
        %v687 = vadd.f32 %v495, %v623
        %v688 = vadd.f32 %v496, %v624
        %v689 = vadd.f32 %v497, %v625
        %v690 = vadd.f32 %v498, %v626
        %v691 = vadd.f32 %v499, %v627
        %v692 = vadd.f32 %v500, %v628
        %v693 = vadd.f32 %v501, %v629
        %v694 = vadd.f32 %v502, %v630
        %v695 = vadd.f32 %v503, %v631
        %v696 = vadd.f32 %v504, %v632
        %v697 = vadd.f32 %v505, %v633
        %v698 = vadd.f32 %v506, %v634
        %v699 = vadd.f32 %v507, %v635
        %v700 = vadd.f32 %v508, %v636
        %v701 = vadd.f32 %v509, %v637
        %v702 = vadd.f32 %v510, %v638
        %v703 = vadd.f32 %v511, %v639
        %v704 = vadd.f32 %v512, %v640
        %v705 = vadd.f32 %v513, %v641
        %v706 = vadd.f32 %v514, %v642
        %v707 = vadd.f32 %v515, %v643
        %v708 = vadd.f32 %v516, %v644
        %v709 = vadd.f32 %v517, %v645
        %v710 = vadd.f32 %v518, %v646
        %v711 = vadd.f32 %v519, %v647
        %v712 = vadd.f32 %v520, %v648
        %v713 = vadd.f32 %v521, %v649
        %vm714 = vcmp.eq.s32.totalorder %v330, 16
        %vm715 = vcmp.eq.s32.totalorder %v331, 16
        %vm716 = vcmp.eq.s32.totalorder %v332, 16
        %vm717 = vcmp.eq.s32.totalorder %v333, 16
        %vm718 = vcmp.eq.s32.totalorder %v334, 16
        %vm719 = vcmp.eq.s32.totalorder %v335, 16
        %vm720 = vcmp.eq.s32.totalorder %v336, 16
        %vm721 = vcmp.eq.s32.totalorder %v337, 16
        %vm722 = vcmp.eq.s32.totalorder %v338, 16
        %vm723 = vcmp.eq.s32.totalorder %v339, 16
        %vm724 = vcmp.eq.s32.totalorder %v340, 16
        %vm725 = vcmp.eq.s32.totalorder %v341, 16
        %vm726 = vcmp.eq.s32.totalorder %v342, 16
        %vm727 = vcmp.eq.s32.totalorder %v343, 16
        %vm728 = vcmp.eq.s32.totalorder %v344, 16
        %vm729 = vcmp.eq.s32.totalorder %v345, 16
        %vm730 = vcmp.eq.s32.totalorder %v346, 16
        %vm731 = vcmp.eq.s32.totalorder %v347, 16
        %vm732 = vcmp.eq.s32.totalorder %v348, 16
        %vm733 = vcmp.eq.s32.totalorder %v349, 16
        %vm734 = vcmp.eq.s32.totalorder %v350, 16
        %vm735 = vcmp.eq.s32.totalorder %v351, 16
        %vm736 = vcmp.eq.s32.totalorder %v352, 16
        %vm737 = vcmp.eq.s32.totalorder %v353, 16
        %vm738 = vcmp.eq.s32.totalorder %v354, 16
        %vm739 = vcmp.eq.s32.totalorder %v355, 16
        %vm740 = vcmp.eq.s32.totalorder %v356, 16
        %vm741 = vcmp.eq.s32.totalorder %v357, 16
        %vm742 = vcmp.eq.s32.totalorder %v358, 16
        %vm743 = vcmp.eq.s32.totalorder %v359, 16
        %vm744 = vcmp.eq.s32.totalorder %v360, 16
        %vm745 = vcmp.eq.s32.totalorder %v361, 16
        %vm746 = vcmp.eq.s32.totalorder %v362, 16
        %vm747 = vcmp.eq.s32.totalorder %v363, 16
        %vm748 = vcmp.eq.s32.totalorder %v364, 16
        %vm749 = vcmp.eq.s32.totalorder %v365, 16
        %vm750 = vcmp.eq.s32.totalorder %v366, 16
        %vm751 = vcmp.eq.s32.totalorder %v367, 16
        %vm752 = vcmp.eq.s32.totalorder %v368, 16
        %vm753 = vcmp.eq.s32.totalorder %v369, 16
        %vm754 = vcmp.eq.s32.totalorder %v370, 16
        %vm755 = vcmp.eq.s32.totalorder %v371, 16
        %vm756 = vcmp.eq.s32.totalorder %v372, 16
        %vm757 = vcmp.eq.s32.totalorder %v373, 16
        %vm758 = vcmp.eq.s32.totalorder %v374, 16
        %vm759 = vcmp.eq.s32.totalorder %v375, 16
        %vm760 = vcmp.eq.s32.totalorder %v376, 16
        %vm761 = vcmp.eq.s32.totalorder %v377, 16
        %vm762 = vcmp.eq.s32.totalorder %v378, 16
        %vm763 = vcmp.eq.s32.totalorder %v379, 16
        %vm764 = vcmp.eq.s32.totalorder %v380, 16
        %vm765 = vcmp.eq.s32.totalorder %v381, 16
        %vm766 = vcmp.eq.s32.totalorder %v382, 16
        %vm767 = vcmp.eq.s32.totalorder %v383, 16
        %vm768 = vcmp.eq.s32.totalorder %v384, 16
        %vm769 = vcmp.eq.s32.totalorder %v385, 16
        %vm770 = vcmp.eq.s32.totalorder %v386, 16
        %vm771 = vcmp.eq.s32.totalorder %v387, 16
        %vm772 = vcmp.eq.s32.totalorder %v388, 16
        %vm773 = vcmp.eq.s32.totalorder %v389, 16
        %vm774 = vcmp.eq.s32.totalorder %v390, 16
        %vm775 = vcmp.eq.s32.totalorder %v391, 16
        %vm776 = vcmp.eq.s32.totalorder %v392, 16
        %vm777 = vcmp.eq.s32.totalorder %v393, 16
        %v778 = vsel %vm714, %v283, 0.0
        %v779 = vsel %vm715, %v284, 0.0
        %v780 = vsel %vm716, %v283, 0.0
        %v781 = vsel %vm717, %v284, 0.0
        %v782 = vsel %vm718, %v283, 0.0
        %v783 = vsel %vm719, %v284, 0.0
        %v784 = vsel %vm720, %v283, 0.0
        %v785 = vsel %vm721, %v284, 0.0
        %v786 = vsel %vm722, %v283, 0.0
        %v787 = vsel %vm723, %v284, 0.0
        %v788 = vsel %vm724, %v283, 0.0
        %v789 = vsel %vm725, %v284, 0.0
        %v790 = vsel %vm726, %v283, 0.0
        %v791 = vsel %vm727, %v284, 0.0
        %v792 = vsel %vm728, %v283, 0.0
        %v793 = vsel %vm729, %v284, 0.0
        %v794 = vsel %vm730, %v283, 0.0
        %v795 = vsel %vm731, %v284, 0.0
        %v796 = vsel %vm732, %v283, 0.0
        %v797 = vsel %vm733, %v284, 0.0
        %v798 = vsel %vm734, %v283, 0.0
        %v799 = vsel %vm735, %v284, 0.0
        %v800 = vsel %vm736, %v283, 0.0
        %v801 = vsel %vm737, %v284, 0.0
        %v802 = vsel %vm738, %v283, 0.0
        %v803 = vsel %vm739, %v284, 0.0
        %v804 = vsel %vm740, %v283, 0.0
        %v805 = vsel %vm741, %v284, 0.0
        %v806 = vsel %vm742, %v283, 0.0
        %v807 = vsel %vm743, %v284, 0.0
        %v808 = vsel %vm744, %v283, 0.0
        %v809 = vsel %vm745, %v284, 0.0
        %v810 = vsel %vm746, %v283, 0.0
        %v811 = vsel %vm747, %v284, 0.0
        %v812 = vsel %vm748, %v283, 0.0
        %v813 = vsel %vm749, %v284, 0.0
        %v814 = vsel %vm750, %v283, 0.0
        %v815 = vsel %vm751, %v284, 0.0
        %v816 = vsel %vm752, %v283, 0.0
        %v817 = vsel %vm753, %v284, 0.0
        %v818 = vsel %vm754, %v283, 0.0
        %v819 = vsel %vm755, %v284, 0.0
        %v820 = vsel %vm756, %v283, 0.0
        %v821 = vsel %vm757, %v284, 0.0
        %v822 = vsel %vm758, %v283, 0.0
        %v823 = vsel %vm759, %v284, 0.0
        %v824 = vsel %vm760, %v283, 0.0
        %v825 = vsel %vm761, %v284, 0.0
        %v826 = vsel %vm762, %v283, 0.0
        %v827 = vsel %vm763, %v284, 0.0
        %v828 = vsel %vm764, %v283, 0.0
        %v829 = vsel %vm765, %v284, 0.0
        %v830 = vsel %vm766, %v283, 0.0
        %v831 = vsel %vm767, %v284, 0.0
        %v832 = vsel %vm768, %v283, 0.0
        %v833 = vsel %vm769, %v284, 0.0
        %v834 = vsel %vm770, %v283, 0.0
        %v835 = vsel %vm771, %v284, 0.0
        %v836 = vsel %vm772, %v283, 0.0
        %v837 = vsel %vm773, %v284, 0.0
        %v838 = vsel %vm774, %v283, 0.0
        %v839 = vsel %vm775, %v284, 0.0
        %v840 = vsel %vm776, %v283, 0.0
        %v841 = vsel %vm777, %v284, 0.0
        %v842 = vadd.f32 %v650, %v778
        %v843 = vadd.f32 %v651, %v779
        %v844 = vadd.f32 %v652, %v780
        %v845 = vadd.f32 %v653, %v781
        %v846 = vadd.f32 %v654, %v782
        %v847 = vadd.f32 %v655, %v783
        %v848 = vadd.f32 %v656, %v784
        %v849 = vadd.f32 %v657, %v785
        %v850 = vadd.f32 %v658, %v786
        %v851 = vadd.f32 %v659, %v787
        %v852 = vadd.f32 %v660, %v788
        %v853 = vadd.f32 %v661, %v789
        %v854 = vadd.f32 %v662, %v790
        %v855 = vadd.f32 %v663, %v791
        %v856 = vadd.f32 %v664, %v792
        %v857 = vadd.f32 %v665, %v793
        %v858 = vadd.f32 %v666, %v794
        %v859 = vadd.f32 %v667, %v795
        %v860 = vadd.f32 %v668, %v796
        %v861 = vadd.f32 %v669, %v797
        %v862 = vadd.f32 %v670, %v798
        %v863 = vadd.f32 %v671, %v799
        %v864 = vadd.f32 %v672, %v800
        %v865 = vadd.f32 %v673, %v801
        %v866 = vadd.f32 %v674, %v802
        %v867 = vadd.f32 %v675, %v803
        %v868 = vadd.f32 %v676, %v804
        %v869 = vadd.f32 %v677, %v805
        %v870 = vadd.f32 %v678, %v806
        %v871 = vadd.f32 %v679, %v807
        %v872 = vadd.f32 %v680, %v808
        %v873 = vadd.f32 %v681, %v809
        %v874 = vadd.f32 %v682, %v810
        %v875 = vadd.f32 %v683, %v811
        %v876 = vadd.f32 %v684, %v812
        %v877 = vadd.f32 %v685, %v813
        %v878 = vadd.f32 %v686, %v814
        %v879 = vadd.f32 %v687, %v815
        %v880 = vadd.f32 %v688, %v816
        %v881 = vadd.f32 %v689, %v817
        %v882 = vadd.f32 %v690, %v818
        %v883 = vadd.f32 %v691, %v819
        %v884 = vadd.f32 %v692, %v820
        %v885 = vadd.f32 %v693, %v821
        %v886 = vadd.f32 %v694, %v822
        %v887 = vadd.f32 %v695, %v823
        %v888 = vadd.f32 %v696, %v824
        %v889 = vadd.f32 %v697, %v825
        %v890 = vadd.f32 %v698, %v826
        %v891 = vadd.f32 %v699, %v827
        %v892 = vadd.f32 %v700, %v828
        %v893 = vadd.f32 %v701, %v829
        %v894 = vadd.f32 %v702, %v830
        %v895 = vadd.f32 %v703, %v831
        %v896 = vadd.f32 %v704, %v832
        %v897 = vadd.f32 %v705, %v833
        %v898 = vadd.f32 %v706, %v834
        %v899 = vadd.f32 %v707, %v835
        %v900 = vadd.f32 %v708, %v836
        %v901 = vadd.f32 %v709, %v837
        %v902 = vadd.f32 %v710, %v838
        %v903 = vadd.f32 %v711, %v839
        %v904 = vadd.f32 %v712, %v840
        %v905 = vadd.f32 %v713, %v841
        %vm906 = vcmp.eq.s32.totalorder %v330, 17
        %vm907 = vcmp.eq.s32.totalorder %v331, 17
        %vm908 = vcmp.eq.s32.totalorder %v332, 17
        %vm909 = vcmp.eq.s32.totalorder %v333, 17
        %vm910 = vcmp.eq.s32.totalorder %v334, 17
        %vm911 = vcmp.eq.s32.totalorder %v335, 17
        %vm912 = vcmp.eq.s32.totalorder %v336, 17
        %vm913 = vcmp.eq.s32.totalorder %v337, 17
        %vm914 = vcmp.eq.s32.totalorder %v338, 17
        %vm915 = vcmp.eq.s32.totalorder %v339, 17
        %vm916 = vcmp.eq.s32.totalorder %v340, 17
        %vm917 = vcmp.eq.s32.totalorder %v341, 17
        %vm918 = vcmp.eq.s32.totalorder %v342, 17
        %vm919 = vcmp.eq.s32.totalorder %v343, 17
        %vm920 = vcmp.eq.s32.totalorder %v344, 17
        %vm921 = vcmp.eq.s32.totalorder %v345, 17
        %vm922 = vcmp.eq.s32.totalorder %v346, 17
        %vm923 = vcmp.eq.s32.totalorder %v347, 17
        %vm924 = vcmp.eq.s32.totalorder %v348, 17
        %vm925 = vcmp.eq.s32.totalorder %v349, 17
        %vm926 = vcmp.eq.s32.totalorder %v350, 17
        %vm927 = vcmp.eq.s32.totalorder %v351, 17
        %vm928 = vcmp.eq.s32.totalorder %v352, 17
        %vm929 = vcmp.eq.s32.totalorder %v353, 17
        %vm930 = vcmp.eq.s32.totalorder %v354, 17
        %vm931 = vcmp.eq.s32.totalorder %v355, 17
        %vm932 = vcmp.eq.s32.totalorder %v356, 17
        %vm933 = vcmp.eq.s32.totalorder %v357, 17
        %vm934 = vcmp.eq.s32.totalorder %v358, 17
        %vm935 = vcmp.eq.s32.totalorder %v359, 17
        %vm936 = vcmp.eq.s32.totalorder %v360, 17
        %vm937 = vcmp.eq.s32.totalorder %v361, 17
        %vm938 = vcmp.eq.s32.totalorder %v362, 17
        %vm939 = vcmp.eq.s32.totalorder %v363, 17
        %vm940 = vcmp.eq.s32.totalorder %v364, 17
        %vm941 = vcmp.eq.s32.totalorder %v365, 17
        %vm942 = vcmp.eq.s32.totalorder %v366, 17
        %vm943 = vcmp.eq.s32.totalorder %v367, 17
        %vm944 = vcmp.eq.s32.totalorder %v368, 17
        %vm945 = vcmp.eq.s32.totalorder %v369, 17
        %vm946 = vcmp.eq.s32.totalorder %v370, 17
        %vm947 = vcmp.eq.s32.totalorder %v371, 17
        %vm948 = vcmp.eq.s32.totalorder %v372, 17
        %vm949 = vcmp.eq.s32.totalorder %v373, 17
        %vm950 = vcmp.eq.s32.totalorder %v374, 17
        %vm951 = vcmp.eq.s32.totalorder %v375, 17
        %vm952 = vcmp.eq.s32.totalorder %v376, 17
        %vm953 = vcmp.eq.s32.totalorder %v377, 17
        %vm954 = vcmp.eq.s32.totalorder %v378, 17
        %vm955 = vcmp.eq.s32.totalorder %v379, 17
        %vm956 = vcmp.eq.s32.totalorder %v380, 17
        %vm957 = vcmp.eq.s32.totalorder %v381, 17
        %vm958 = vcmp.eq.s32.totalorder %v382, 17
        %vm959 = vcmp.eq.s32.totalorder %v383, 17
        %vm960 = vcmp.eq.s32.totalorder %v384, 17
        %vm961 = vcmp.eq.s32.totalorder %v385, 17
        %vm962 = vcmp.eq.s32.totalorder %v386, 17
        %vm963 = vcmp.eq.s32.totalorder %v387, 17
        %vm964 = vcmp.eq.s32.totalorder %v388, 17
        %vm965 = vcmp.eq.s32.totalorder %v389, 17
        %vm966 = vcmp.eq.s32.totalorder %v390, 17
        %vm967 = vcmp.eq.s32.totalorder %v391, 17
        %vm968 = vcmp.eq.s32.totalorder %v392, 17
        %vm969 = vcmp.eq.s32.totalorder %v393, 17
        %v970 = vsel %vm906, %v289, 0.0
        %v971 = vsel %vm907, %v290, 0.0
        %v972 = vsel %vm908, %v289, 0.0
        %v973 = vsel %vm909, %v290, 0.0
        %v974 = vsel %vm910, %v289, 0.0
        %v975 = vsel %vm911, %v290, 0.0
        %v976 = vsel %vm912, %v289, 0.0
        %v977 = vsel %vm913, %v290, 0.0
        %v978 = vsel %vm914, %v289, 0.0
        %v979 = vsel %vm915, %v290, 0.0
        %v980 = vsel %vm916, %v289, 0.0
        %v981 = vsel %vm917, %v290, 0.0
        %v982 = vsel %vm918, %v289, 0.0
        %v983 = vsel %vm919, %v290, 0.0
        %v984 = vsel %vm920, %v289, 0.0
        %v985 = vsel %vm921, %v290, 0.0
        %v986 = vsel %vm922, %v289, 0.0
        %v987 = vsel %vm923, %v290, 0.0
        %v988 = vsel %vm924, %v289, 0.0
        %v989 = vsel %vm925, %v290, 0.0
        %v990 = vsel %vm926, %v289, 0.0
        %v991 = vsel %vm927, %v290, 0.0
        %v992 = vsel %vm928, %v289, 0.0
        %v993 = vsel %vm929, %v290, 0.0
        %v994 = vsel %vm930, %v289, 0.0
        %v995 = vsel %vm931, %v290, 0.0
        %v996 = vsel %vm932, %v289, 0.0
        %v997 = vsel %vm933, %v290, 0.0
        %v998 = vsel %vm934, %v289, 0.0
        %v999 = vsel %vm935, %v290, 0.0
        %v1000 = vsel %vm936, %v289, 0.0
        %v1001 = vsel %vm937, %v290, 0.0
        %v1002 = vsel %vm938, %v289, 0.0
        %v1003 = vsel %vm939, %v290, 0.0
        %v1004 = vsel %vm940, %v289, 0.0
        %v1005 = vsel %vm941, %v290, 0.0
        %v1006 = vsel %vm942, %v289, 0.0
        %v1007 = vsel %vm943, %v290, 0.0
        %v1008 = vsel %vm944, %v289, 0.0
        %v1009 = vsel %vm945, %v290, 0.0
        %v1010 = vsel %vm946, %v289, 0.0
        %v1011 = vsel %vm947, %v290, 0.0
        %v1012 = vsel %vm948, %v289, 0.0
        %v1013 = vsel %vm949, %v290, 0.0
        %v1014 = vsel %vm950, %v289, 0.0
        %v1015 = vsel %vm951, %v290, 0.0
        %v1016 = vsel %vm952, %v289, 0.0
        %v1017 = vsel %vm953, %v290, 0.0
        %v1018 = vsel %vm954, %v289, 0.0
        %v1019 = vsel %vm955, %v290, 0.0
        %v1020 = vsel %vm956, %v289, 0.0
        %v1021 = vsel %vm957, %v290, 0.0
        %v1022 = vsel %vm958, %v289, 0.0
        %v1023 = vsel %vm959, %v290, 0.0
        %v1024 = vsel %vm960, %v289, 0.0
        %v1025 = vsel %vm961, %v290, 0.0
        %v1026 = vsel %vm962, %v289, 0.0
        %v1027 = vsel %vm963, %v290, 0.0
        %v1028 = vsel %vm964, %v289, 0.0
        %v1029 = vsel %vm965, %v290, 0.0
        %v1030 = vsel %vm966, %v289, 0.0
        %v1031 = vsel %vm967, %v290, 0.0
        %v1032 = vsel %vm968, %v289, 0.0
        %v1033 = vsel %vm969, %v290, 0.0
        %v1034 = vadd.f32 %v842, %v970
        %v1035 = vadd.f32 %v843, %v971
        %v1036 = vadd.f32 %v844, %v972
        %v1037 = vadd.f32 %v845, %v973
        %v1038 = vadd.f32 %v846, %v974
        %v1039 = vadd.f32 %v847, %v975
        %v1040 = vadd.f32 %v848, %v976
        %v1041 = vadd.f32 %v849, %v977
        %v1042 = vadd.f32 %v850, %v978
        %v1043 = vadd.f32 %v851, %v979
        %v1044 = vadd.f32 %v852, %v980
        %v1045 = vadd.f32 %v853, %v981
        %v1046 = vadd.f32 %v854, %v982
        %v1047 = vadd.f32 %v855, %v983
        %v1048 = vadd.f32 %v856, %v984
        %v1049 = vadd.f32 %v857, %v985
        %v1050 = vadd.f32 %v858, %v986
        %v1051 = vadd.f32 %v859, %v987
        %v1052 = vadd.f32 %v860, %v988
        %v1053 = vadd.f32 %v861, %v989
        %v1054 = vadd.f32 %v862, %v990
        %v1055 = vadd.f32 %v863, %v991
        %v1056 = vadd.f32 %v864, %v992
        %v1057 = vadd.f32 %v865, %v993
        %v1058 = vadd.f32 %v866, %v994
        %v1059 = vadd.f32 %v867, %v995
        %v1060 = vadd.f32 %v868, %v996
        %v1061 = vadd.f32 %v869, %v997
        %v1062 = vadd.f32 %v870, %v998
        %v1063 = vadd.f32 %v871, %v999
        %v1064 = vadd.f32 %v872, %v1000
        %v1065 = vadd.f32 %v873, %v1001
        %v1066 = vadd.f32 %v874, %v1002
        %v1067 = vadd.f32 %v875, %v1003
        %v1068 = vadd.f32 %v876, %v1004
        %v1069 = vadd.f32 %v877, %v1005
        %v1070 = vadd.f32 %v878, %v1006
        %v1071 = vadd.f32 %v879, %v1007
        %v1072 = vadd.f32 %v880, %v1008
        %v1073 = vadd.f32 %v881, %v1009
        %v1074 = vadd.f32 %v882, %v1010
        %v1075 = vadd.f32 %v883, %v1011
        %v1076 = vadd.f32 %v884, %v1012
        %v1077 = vadd.f32 %v885, %v1013
        %v1078 = vadd.f32 %v886, %v1014
        %v1079 = vadd.f32 %v887, %v1015
        %v1080 = vadd.f32 %v888, %v1016
        %v1081 = vadd.f32 %v889, %v1017
        %v1082 = vadd.f32 %v890, %v1018
        %v1083 = vadd.f32 %v891, %v1019
        %v1084 = vadd.f32 %v892, %v1020
        %v1085 = vadd.f32 %v893, %v1021
        %v1086 = vadd.f32 %v894, %v1022
        %v1087 = vadd.f32 %v895, %v1023
        %v1088 = vadd.f32 %v896, %v1024
        %v1089 = vadd.f32 %v897, %v1025
        %v1090 = vadd.f32 %v898, %v1026
        %v1091 = vadd.f32 %v899, %v1027
        %v1092 = vadd.f32 %v900, %v1028
        %v1093 = vadd.f32 %v901, %v1029
        %v1094 = vadd.f32 %v902, %v1030
        %v1095 = vadd.f32 %v903, %v1031
        %v1096 = vadd.f32 %v904, %v1032
        %v1097 = vadd.f32 %v905, %v1033
        %v1098 = vld [vmem:[%s164] sm:$0xff]
        %v1100 = vcombine.high %v1098, %v1098
        %v1102 = vpack.c.bf16 %v1098, %v1098
        %v1103 = vpack.c.bf16 %v1100, %v1100
        %v1104 = vpack.c.bf16 %v1036, %v1034
        %v1105 = vpack.c.bf16 %v1037, %v1035
        %v1106 = vpack.c.bf16 %v1040, %v1038
        %v1107 = vpack.c.bf16 %v1041, %v1039
        %v1108 = vpack.c.bf16 %v1044, %v1042
        %v1109 = vpack.c.bf16 %v1045, %v1043
        %v1110 = vpack.c.bf16 %v1048, %v1046
        %v1111 = vpack.c.bf16 %v1049, %v1047
        %v1112 = vpack.c.bf16 %v1052, %v1050
        %v1113 = vpack.c.bf16 %v1053, %v1051
        %v1114 = vpack.c.bf16 %v1056, %v1054
        %v1115 = vpack.c.bf16 %v1057, %v1055
        %v1116 = vpack.c.bf16 %v1060, %v1058
        %v1117 = vpack.c.bf16 %v1061, %v1059
        %v1118 = vpack.c.bf16 %v1064, %v1062
        %v1119 = vpack.c.bf16 %v1065, %v1063
        %v1120 = vpack.c.bf16 %v1068, %v1066
        %v1121 = vpack.c.bf16 %v1069, %v1067
        %v1122 = vpack.c.bf16 %v1072, %v1070
        %v1123 = vpack.c.bf16 %v1073, %v1071
        %v1124 = vpack.c.bf16 %v1076, %v1074
        %v1125 = vpack.c.bf16 %v1077, %v1075
        %v1126 = vpack.c.bf16 %v1080, %v1078
        %v1127 = vpack.c.bf16 %v1081, %v1079
        %v1128 = vpack.c.bf16 %v1084, %v1082
        %v1129 = vpack.c.bf16 %v1085, %v1083
        %v1130 = vpack.c.bf16 %v1088, %v1086
        %v1131 = vpack.c.bf16 %v1089, %v1087
        %v1132 = vpack.c.bf16 %v1092, %v1090
        %v1133 = vpack.c.bf16 %v1093, %v1091
        %v1134 = vpack.c.bf16 %v1096, %v1094
        %v1135 = vpack.c.bf16 %v1097, %v1095
        %1136 = vmatprep.subr.bf16.mxu0 %v1105
        %1137 = vmatpush1.bf16.msra.mxu0 %v1104
        %1138 = vmatprep.subr.bf16.mxu0 %v1107
        %1139 = vmatpush1.bf16.msra.mxu0 %v1106
        %1140 = vmatprep.subr.bf16.mxu0 %v1109
        %1141 = vmatpush1.bf16.msra.mxu0 %v1108
        %1142 = vmatprep.subr.bf16.mxu0 %v1111
        %1143 = vmatpush1.bf16.msra.mxu0 %v1110
        %1144 = vmatprep.subr.bf16.mxu0 %v1113
        %1145 = vmatpush1.bf16.msra.mxu0 %v1112
        %1146 = vmatprep.subr.bf16.mxu0 %v1115
        %1147 = vmatpush1.bf16.msra.mxu0 %v1114
        %1148 = vmatprep.subr.bf16.mxu0 %v1117
        %1149 = vmatpush1.bf16.msra.mxu0 %v1116
        %1150 = vmatprep.subr.bf16.mxu0 %v1119
        %1151 = vmatpush1.bf16.msra.mxu0 %v1118
        %1152 = vmatprep.subr.bf16.mxu0 %v1121
        %1153 = vmatpush1.bf16.msra.mxu0 %v1120
        %1154 = vmatprep.subr.bf16.mxu0 %v1123
        %1155 = vmatpush1.bf16.msra.mxu0 %v1122
        %1156 = vmatprep.subr.bf16.mxu0 %v1125
        %1157 = vmatpush1.bf16.msra.mxu0 %v1124
        %1158 = vmatprep.subr.bf16.mxu0 %v1127
        %1159 = vmatpush1.bf16.msra.mxu0 %v1126
        %1160 = vmatprep.subr.bf16.mxu0 %v1129
        %1161 = vmatpush1.bf16.msra.mxu0 %v1128
        %1162 = vmatprep.subr.bf16.mxu0 %v1131
        %1163 = vmatpush1.bf16.msra.mxu0 %v1130
        %1164 = vmatprep.subr.bf16.mxu0 %v1133
        %1165 = vmatpush1.bf16.msra.mxu0 %v1132
        %1166 = vmatprep.subr.bf16.mxu0 %v1135
        %1167 = vmatpush1.bf16.msra.mxu0 %v1134
        %1168 = vmatprep.mubr.bf16.mxu0 %v1103
        %1169 = vmatmul.mubr.bf16.gmra.mrb[0].mxu0 %v1102
        %v1170 = vpop.f32.mrb[0].mxu0
        %v1171 = vadd.f32 0.0, %v1170
        %v1172 = vpop.f32.mrb[0].mxu0
        %v1173 = vadd.f32 0.0, %v1172
        %v1174 = vpop.f32.mrb[0].mxu0
        %v1175 = vpop.f32.mrb[0].mxu0
        %1176 = vdwg.mxu0
        %v1179 = vcombine.low %v1171, %v1173
        %1181 = vst [vmem:[%s185] sm:$0xff] %v1179
        %s1182 = sand.u32 %s89, 1
        %s1183 = scalar_lea.sflag [#allocation4], %s1182
        %s1184 = sand.u32 %s89, 1
        %s1185 = smul.addr %s1184, 8
        %s1186 = scalar_lea.vmem [#allocation7], %s1185
        // Predicated region
        $region37: #{tpu_custom_call.1} parent=27 // pred_check
          %p1187 = pneg %p99
        $region38: #{tpu_custom_call.1} parent=27 // pred_check_branch
          %1189 = sbr.rel (%p1187) target = $region40
        $region39: #{tpu_custom_call.1} parent=27 // pred_region
          %s1190 = smul.u32 2, %s25
          %s1192 = ssub.s32 128, 128
          %1193 = vsyncadd %s1183, %s1192
          %s1194 = smul.addr %s24, 2
          %s1195 = sadd.s32 %s1190, %s1194
          %s1196 = smul.addr %s1195, 64
          %s1197 = scalar_lea.hbm %s2, %s1196
          %s1199 = sshll.u32 %s1186, 4
          %s1200 = int_to_ptr.vmem [resolvable:$true] %s1199
          %1202 = dma.vmem_to_hbm [thread:$0]  %s1200, 128, %s1197, %s1183
        $region40: #{tpu_custom_call.1} parent=27 // pred_fallthru
          _
      $region28: #{tpu_custom_call.1} parent=5 // pred_fallthru
        _
      %p1203 = scmp.le.s32.totalorder 2, %s15
      // Predicated region
      $region41: #{tpu_custom_call.1} parent=5 // pred_check
        %p1204 = pneg %p1203
      $region42: #{tpu_custom_call.1} parent=5 // pred_check_branch
        %1206 = sbr.rel (%p1204) target = $region44
      $region43: #{tpu_custom_call.1} parent=5 // pred_region
        %s1207 = ssub.s32 %s15, 2
        // Predicated region
        $region45: #{tpu_custom_call.1} parent=43 // pred_check
          %p1208 = pneg %p105
        $region46: #{tpu_custom_call.1} parent=43 // pred_check_branch
          %1210 = sbr.rel (%p1208) target = $region48
        $region47: #{tpu_custom_call.1} parent=43 // pred_region
          %s1211 = sand.u32 %s90, 1
          %s1212 = scalar_lea.sflag [#allocation4], %s1211
          %s1213 = sand.u32 %s90, 1
          %s1214 = smul.addr %s1213, 8
          %s1215 = scalar_lea.vmem [#allocation7], %s1214
          %1216 = dma.done %s1212, 128
        $region48: #{tpu_custom_call.1} parent=43 // pred_fallthru
          _
      $region44: #{tpu_custom_call.1} parent=5 // pred_fallthru
        _
    $region6: #{tpu_custom_call.1} parent=1 // loop_footer
      %s19 = sadd.s32 1, %s15
    $region7: #{tpu_custom_call.1} parent=1 // loop_footer_branch
      %14 = sbr.rel target = $region3
    $region8: #{tpu_custom_call.1} parent=1 // loop_exit
      _
    %1217 = vsyncpa [#allocation3], 1
    %s1218 = scalar_lea.sflag [#allocation3], 1
    %1219 = vsyncpa %s1218, 1
    %1220 = vsyncpa [#allocation4], 1
    %s1221 = scalar_lea.sflag [#allocation4], 1
    %1222 = vsyncpa %s1221, 1
    %1223 = vsyncpa [#allocation5], 1
    %s1224 = scalar_lea.sflag [#allocation5], 1
    %1225 = vsyncpa %s1224, 1

</llo_original>
